<compile_context>
chip_gen: v7x
topology: tpu7x:2x2x1
jax: 0.10.0
libtpu: 0.0.40
codegen_flags: <defaults>
</compile_context>

<pallas_src>
import functools

import jax
import jax.numpy as jnp
from jax.experimental import pallas as pl
from jax.experimental.pallas import tpu as pltpu


# ----------------------------------------------------------------------------
# Projection kernels (hoisted x @ W_ih + b, and the final FC)
# ----------------------------------------------------------------------------
def _proj_gates_l0_kernel(x_ref, wf_ref, wb_ref, bf_ref, bb_ref,
                          of_ref, ob_ref):
    """Layer-0 input projection for both directions (bf16 out, f32 acc)."""
    x = x_ref[...]
    accf = jnp.dot(x, wf_ref[...], preferred_element_type=jnp.float32)
    accb = jnp.dot(x, wb_ref[...], preferred_element_type=jnp.float32)
    of_ref[...] = (accf + bf_ref[...]).astype(of_ref.dtype)
    ob_ref[...] = (accb + bb_ref[...]).astype(ob_ref.dtype)


def _proj_gates_ln_kernel(xf_ref, xb_ref, wff_ref, wbf_ref, wfb_ref, wbb_ref,
                          bf_ref, bb_ref, of_ref, ob_ref):
    """Layer>0 input projection.  Consumes split fwd/bwd activations directly,
    so no concatenate([fwd, bwd], -1) HBM pass is ever materialized."""
    xf = xf_ref[...]
    xb = xb_ref[...]
    accf = jnp.dot(xf, wff_ref[...], preferred_element_type=jnp.float32)
    accf = accf + jnp.dot(xb, wbf_ref[...], preferred_element_type=jnp.float32)
    accb = jnp.dot(xf, wfb_ref[...], preferred_element_type=jnp.float32)
    accb = accb + jnp.dot(xb, wbb_ref[...], preferred_element_type=jnp.float32)
    of_ref[...] = (accf + bf_ref[...]).astype(of_ref.dtype)
    ob_ref[...] = (accb + bb_ref[...]).astype(ob_ref.dtype)


def _fc_kernel(xf_ref, xb_ref, wf_ref, wb_ref, b_ref, o_ref):
    """Final FC on the split fwd/bwd streams (f32 logits)."""
    # TODO(synk): for write-bound tails, pad output_dim to a multiple of 128
    # inside the kernel (lane-dense stores) and slice outside.
    acc = jnp.dot(xf_ref[...], wf_ref[...], preferred_element_type=jnp.float32)
    acc = acc + jnp.dot(xb_ref[...], wb_ref[...],
                        preferred_element_type=jnp.float32)
    o_ref[...] = (acc + b_ref[...]).astype(o_ref.dtype)


def row_tiled_matmul(kernel, inputs, weights, out_shapes, *, row_tile=512,
                     vmem_limit_bytes=48 * 1024 * 1024):
    """Row-tiled projection: grid over row tiles of the [T*B, .] inputs.

    Row tile target is 512 (mem-bound projections approach HBM roofline at
    512 on v6e while staying comfortably inside v7x's 64 MiB VMEM); the
    scoped VMEM limit is raised to cover the double-buffered output tiles.
    """
    n = inputs[0].shape[0]
    tn = min(row_tile, n)
    grid = (pl.cdiv(n, tn),)

    in_specs = [pl.BlockSpec((tn, x.shape[1]), lambda i: (i, 0))
                for x in inputs]
    in_specs += [pl.BlockSpec(w.shape, lambda i: (0, 0)) for w in weights]

    if len(out_shapes) == 1:
        out_shape = out_shapes[0]
        out_specs = pl.BlockSpec((tn, out_shapes[0].shape[1]),
                                 lambda i: (i, 0))
    else:
        out_shape = tuple(out_shapes)
        out_specs = tuple(pl.BlockSpec((tn, s.shape[1]), lambda i: (i, 0))
                          for s in out_shapes)

    return pl.pallas_call(
        kernel,
        out_shape=out_shape,
        grid=grid,
        in_specs=in_specs,
        out_specs=out_specs,
        compiler_params=pltpu.CompilerParams(
            dimension_semantics=("parallel",),
            vmem_limit_bytes=vmem_limit_bytes),
    )(*inputs, *weights)


# ----------------------------------------------------------------------------
# Time-chunked bidirectional LSTM recurrence
# ----------------------------------------------------------------------------
def _bilstm_chunk_kernel(len_ref, gf_ref, gb_ref, whhf_ref, whhb_ref,
                         of_ref, ob_ref, hf, cf, hb, cb,
                         *, seq_len, chunk, hidden_dim, unroll):
    """One (batch_tile, time_chunk) grid step of the fused bi-LSTM.

    len_ref:  [Bt, 1]       int32  sequence lengths
    gf_ref:   [Tc, Bt, 4H]  bf16   x@W_ih+b, FORWARD dir, times k*Tc..k*Tc+Tc-1
    gb_ref:   [Tc, Bt, 4H]  bf16   x@W_ih+b, BACKWARD dir, the mirrored chunk
    whhf/b:   [H, 4H]       bf16   per-direction recurrent weights
    of/ob:    [Tc, Bt, H]   bf16   per-direction hidden outputs (0 at pads)
    hf/cf/hb/cb: [Bt, H]    f32    state scratch, carried across time chunks
    """
    H = hidden_dim
    k = pl.program_id(1)                      # time-chunk index ('arbitrary')

    @pl.when(k == 0)
    def _():                                  # fresh state per batch tile
        hf[...] = jnp.zeros_like(hf)
        cf[...] = jnp.zeros_like(cf)
        hb[...] = jnp.zeros_like(hb)
        cb[...] = jnp.zeros_like(cb)

    lengths = len_ref[...]                    # [Bt, 1] int32 (tiny; hoisted)

    def cell(gates, c_prev):
        i_g = jax.nn.sigmoid(gates[:, 0:H])
        f_g = jax.nn.sigmoid(gates[:, H:2 * H])
        g_g = jnp.tanh(gates[:, 2 * H:3 * H])
        o_g = jax.nn.sigmoid(gates[:, 3 * H:4 * H])
        c_new = f_g * c_prev + i_g * g_g
        h_new = o_g * jnp.tanh(c_new)
        return h_new, c_new

    def step(i, carry):
        t_f = k * chunk + i                   # global forward time index
        t_b = seq_len - 1 - t_f               # global backward time index
        i_b = chunk - 1 - i                   # local index in the bwd chunk

        hf_prev = hf[...]
        hb_prev = hb[...]

        # Two independent per-direction h @ W_hh matmuls (no concat, no 2x-MAC
        # block-diagonal); W_hh consumed from its ref every step.
        ghh_f = jnp.dot(hf_prev.astype(jnp.bfloat16), whhf_ref[...],
                        preferred_element_type=jnp.float32)       # [Bt, 4H]
        ghh_b = jnp.dot(hb_prev.astype(jnp.bfloat16), whhb_ref[...],
                        preferred_element_type=jnp.float32)

        gates_f = gf_ref[i].astype(jnp.float32) + ghh_f
        gates_b = gb_ref[i_b].astype(jnp.float32) + ghh_b

        hf_new, cf_new = cell(gates_f, cf[...])
        hb_new, cb_new = cell(gates_b, cb[...])

        mask_f = lengths > t_f                                    # [Bt, 1]
        mask_b = lengths > t_b

        hf[...] = jnp.where(mask_f, hf_new, hf_prev)
        cf[...] = jnp.where(mask_f, cf_new, cf[...])
        hb[...] = jnp.where(mask_b, hb_new, hb_prev)
        cb[...] = jnp.where(mask_b, cb_new, cb[...])

        of_ref[i] = jnp.where(mask_f, hf_new, 0.0).astype(of_ref.dtype)
        ob_ref[i_b] = jnp.where(mask_b, hb_new, 0.0).astype(ob_ref.dtype)
        return carry

    jax.lax.fori_loop(0, chunk, step, 0, unroll=unroll)


def _pick_time_chunk(seq_len, target=32):
    for c in range(min(seq_len, target), 0, -1):
        if seq_len % c == 0:
            return c
    return seq_len


def bilstm_layer(gates_f, gates_b, lengths_b1, whh_f, whh_b, hidden_dim, *,
                 time_chunk=None):
    """gates_f/gates_b: [T, B, 4H] bf16 (time-major, natural time order);
    whh_f/whh_b: [H, 4H] bf16.  Returns bf16 fwd/bwd hidden streams [T, B, H].
    """
    T, B, G4 = gates_f.shape
    H = hidden_dim

    tc = _pick_time_chunk(T) if time_chunk is None else time_chunk
    assert T % tc == 0, "time_chunk must divide the sequence length"
    nk = T // tc

    # Outer "parallel" batch axis: split in half (still a sublane multiple)
    # so v7x's two TensorCores each take a batch shard; 1 step on v5e/v6e.
    bt = B // 2 if (B % 16 == 0) else B
    nb = B // bt

    unroll = tc if tc <= 8 else (4 if tc % 4 == 0 else (2 if tc % 2 == 0 else 1))

    kernel = functools.partial(_bilstm_chunk_kernel, seq_len=T, chunk=tc,
                               hidden_dim=H, unroll=unroll)
    return pl.pallas_call(
        kernel,
        out_shape=(jax.ShapeDtypeStruct((T, B, H), jnp.bfloat16),
                   jax.ShapeDtypeStruct((T, B, H), jnp.bfloat16)),
        grid=(nb, nk),
        in_specs=[
            pl.BlockSpec((bt, 1), lambda b, k: (b, 0)),               # lengths
            pl.BlockSpec((tc, bt, G4), lambda b, k: (k, b, 0)),       # fwd gates
            pl.BlockSpec((tc, bt, G4), lambda b, k: (nk - 1 - k, b, 0)),  # bwd
            pl.BlockSpec((H, G4), lambda b, k: (0, 0)),               # W_hh fwd
            pl.BlockSpec((H, G4), lambda b, k: (0, 0)),               # W_hh bwd
        ],
        out_specs=(pl.BlockSpec((tc, bt, H), lambda b, k: (k, b, 0)),
                   pl.BlockSpec((tc, bt, H), lambda b, k: (nk - 1 - k, b, 0))),
        scratch_shapes=[pltpu.VMEM((bt, H), jnp.float32),   # h fwd
                        pltpu.VMEM((bt, H), jnp.float32),   # c fwd
                        pltpu.VMEM((bt, H), jnp.float32),   # h bwd
                        pltpu.VMEM((bt, H), jnp.float32)],  # c bwd
        compiler_params=pltpu.CompilerParams(
            dimension_semantics=("parallel", "arbitrary"),
            vmem_limit_bytes=48 * 1024 * 1024),
    )(lengths_b1, gates_f, gates_b, whh_f, whh_b)


# ----------------------------------------------------------------------------
# Full forward pass
# ----------------------------------------------------------------------------
def lstm_text_classifier_forward(params, text, text_lengths, *,
                                 time_chunk=None):
    """text: [B, T] int32 token ids; text_lengths: [B] int32 (max == T).

    Returns fc(output) of shape [B, T, output_dim], matching the PyTorch
    module in eval mode (dropout = identity).
    """
    B, T = text.shape
    H = params["hidden_dim"]
    TB = T * B

    # bf16 embedding gathered directly in TIME-MAJOR order (no activation
    # transpose, half the gather traffic).  padding_idx row is zero.
    emb_tm = jnp.take(params["embedding"], text.T, axis=0)          # [T, B, E]
    x0 = emb_tm.reshape(TB, -1)

    lengths_b1 = text_lengths.astype(jnp.int32).reshape(B, 1)

    gate_shapes = [jax.ShapeDtypeStruct((TB, 4 * H), jnp.bfloat16),
                   jax.ShapeDtypeStruct((TB, 4 * H), jnp.bfloat16)]

    xf = xb = None
    for li, layer in enumerate(params["layers"]):
        # Hoisted input projection: one row-tiled pallas_call, bf16 gate
        # tensors per direction (halves the largest HBM intermediate).
        if li == 0:
            gates_f, gates_b = row_tiled_matmul(
                _proj_gates_l0_kernel, [x0],
                [layer["w_f"], layer["w_b"], layer["b_f"], layer["b_b"]],
                gate_shapes)
        else:
            gates_f, gates_b = row_tiled_matmul(
                _proj_gates_ln_kernel, [xf, xb],
                [layer["w_ff"], layer["w_bf"], layer["w_fb"], layer["w_bb"],
                 layer["b_f"], layer["b_b"]],
                gate_shapes)

        gates_f = gates_f.reshape(T, B, 4 * H)
        gates_b = gates_b.reshape(T, B, 4 * H)
        out_f, out_b = bilstm_layer(gates_f, gates_b, lengths_b1,
                                    layer["w_hh_f"], layer["w_hh_b"], H,
                                    time_chunk=time_chunk)
        xf = out_f.reshape(TB, H)
        xb = out_b.reshape(TB, H)
        # inter-layer dropout: identity in eval mode

    # Final FC consumes the split fwd/bwd streams (no concat needed).
    O = params["fc_b"].shape[1]
    logits = row_tiled_matmul(
        _fc_kernel, [xf, xb],
        [params["fc_w_f"], params["fc_w_b"], params["fc_b"]],
        [jax.ShapeDtypeStruct((TB, O), jnp.float32)])                # [T*B, O]
    # TODO(synk): the small [T,B,O]->[B,T,O] transpose could be folded into a
    # 2-D-grid FC out_spec; kept as one cheap XLA op here.
    return jnp.transpose(logits.reshape(T, B, O), (1, 0, 2))         # [B, T, O]


# ----------------------------------------------------------------------------
# Pure-JAX f32 reference (same weights, same packed-sequence semantics)
# ----------------------------------------------------------------------------
def reference_forward(params, text, text_lengths):
    B, T = text.shape
    H = params["hidden_dim"]
    f32 = lambda a: a.astype(jnp.float32)
    lengths = text_lengths.astype(jnp.int32)

    x = jnp.take(f32(params["embedding"]), text, axis=0)             # [B, T, E]

    def run_dir(x_in, w_ih, w_hh, b, reverse):
        def step(carry, t):
            h, c = carry
            g = x_in[:, t] @ w_ih + h @ w_hh + b
            i_g = jax.nn.sigmoid(g[:, 0:H])
            f_g = jax.nn.sigmoid(g[:, H:2 * H])
            g_g = jnp.tanh(g[:, 2 * H:3 * H])
            o_g = jax.nn.sigmoid(g[:, 3 * H:4 * H])
            c_new = f_g * c + i_g * g_g
            h_new = o_g * jnp.tanh(c_new)
            m = (lengths > t)[:, None]
            return ((jnp.where(m, h_new, h), jnp.where(m, c_new, c)),
                    jnp.where(m, h_new, 0.0))
        ts = jnp.arange(T)[::-1] if reverse else jnp.arange(T)
        init = (jnp.zeros((B, H), jnp.float32), jnp.zeros((B, H), jnp.float32))
        _, outs = jax.lax.scan(step, init, ts)
        outs = jnp.swapaxes(outs, 0, 1)                               # [B,T,H]
        return outs[:, ::-1] if reverse else outs

    for li, layer in enumerate(params["layers"]):
        if li == 0:
            w_f = f32(layer["w_f"])
            w_b = f32(layer["w_b"])
        else:
            w_f = jnp.concatenate([f32(layer["w_ff"]), f32(layer["w_bf"])], 0)
            w_b = jnp.concatenate([f32(layer["w_fb"]), f32(layer["w_bb"])], 0)
        out_f = run_dir(x, w_f, f32(layer["w_hh_f"]), layer["b_f"][0], False)
        out_b = run_dir(x, w_b, f32(layer["w_hh_b"]), layer["b_b"][0], True)
        x = jnp.concatenate([out_f, out_b], axis=-1)

    w_fc = jnp.concatenate([f32(params["fc_w_f"]), f32(params["fc_w_b"])], 0)
    return x @ w_fc + params["fc_b"][0]


# ----------------------------------------------------------------------------
# Deterministic parameter construction (matches nn.Module __init__ shapes)
# ----------------------------------------------------------------------------
def init_params(key, vocab_size, embedding_dim, hidden_dim, output_dim,
                n_layers, pad_idx):
    H = hidden_dim
    inv = 1.0 / jnp.sqrt(float(hidden_dim))
    keys = iter(jax.random.split(key, 1 + 8 * n_layers + 2))

    def u(shape):
        return jax.random.uniform(next(keys), shape, jnp.float32, -inv, inv)

    emb = jax.random.normal(next(keys), (vocab_size, embedding_dim),
                            jnp.float32)
    emb = emb.at[pad_idx].set(0.0)                  # padding_idx row is zero

    layers = []
    for l in range(n_layers):
        d_in = embedding_dim if l == 0 else 2 * H
        # PyTorch-layout per-direction parameters, gate order (i, f, g, o).
        w_ih_f = u((4 * H, d_in))
        w_hh_f = u((4 * H, H))
        b_f = u((4 * H,)) + u((4 * H,))             # b_ih + b_hh
        w_ih_b = u((4 * H, d_in))
        w_hh_b = u((4 * H, H))
        b_b = u((4 * H,)) + u((4 * H,))

        layer = {
            "b_f": b_f.reshape(1, 4 * H),           # f32 biases
            "b_b": b_b.reshape(1, 4 * H),
            "w_hh_f": w_hh_f.T.astype(jnp.bfloat16),  # [H, 4H]
            "w_hh_b": w_hh_b.T.astype(jnp.bfloat16),
        }
        if l == 0:
            layer["w_f"] = w_ih_f.T.astype(jnp.bfloat16)   # [E, 4H]
            layer["w_b"] = w_ih_b.T.astype(jnp.bfloat16)
        else:
            # Pre-split so fwd/bwd streams are consumed without a concat.
            layer["w_ff"] = w_ih_f[:, :H].T.astype(jnp.bfloat16)   # [H, 4H]
            layer["w_bf"] = w_ih_f[:, H:].T.astype(jnp.bfloat16)
            layer["w_fb"] = w_ih_b[:, :H].T.astype(jnp.bfloat16)
            layer["w_bb"] = w_ih_b[:, H:].T.astype(jnp.bfloat16)
        layers.append(layer)

    fc_w = u((output_dim, 2 * H)).T                 # [2H, O]
    fc_b = u((output_dim,)).reshape(1, output_dim)
    return {
        "embedding": emb.astype(jnp.bfloat16),
        "layers": layers,
        "fc_w_f": fc_w[:H].astype(jnp.bfloat16),
        "fc_w_b": fc_w[H:].astype(jnp.bfloat16),
        "fc_b": fc_b,
        "hidden_dim": H,
    }


if __name__ == "__main__":
    # Small, module-consistent shapes.
    vocab_size, embedding_dim, hidden_dim, output_dim = 50, 16, 32, 4
    n_layers, pad_idx = 2, 0
    B, T = 2, 8

    key = jax.random.PRNGKey(0)
    k_param, k_text = jax.random.split(key)

    params = init_params(k_param, vocab_size, embedding_dim, hidden_dim,
                         output_dim, n_layers, pad_idx)

    text_lengths = jnp.array([T, 5], dtype=jnp.int32)   # max length == T
    text = jax.random.randint(k_text, (B, T), 1, vocab_size, dtype=jnp.int32)
    # zero out (pad) positions beyond each sequence's length
    pos = jnp.arange(T, dtype=jnp.int32)[None, :]
    text = jnp.where(pos < text_lengths[:, None], text, pad_idx)

    # time_chunk=4 exercises the multi-chunk state carry (T=8 -> 2 chunks).
    out = lstm_text_classifier_forward(params, text, text_lengths,
                                       time_chunk=4)
    out = jax.block_until_ready(out)

    assert out.shape == (B, T, output_dim)
    assert bool(jnp.all(jnp.isfinite(out)))

    # Tolerance-asserted pure-JAX reference (bf16 activation path vs f32).
    ref = jax.block_until_ready(reference_forward(params, text, text_lengths))
    max_err = float(jnp.max(jnp.abs(out - ref)))
    assert max_err < 5e-2, f"mismatch vs reference: {max_err}"

    print("KERNEL_OK")
</pallas_src>

<mosaic_0001>
module attributes {stable_mosaic.version = 11 : i64} {
  func.func @_proj_gates_l0_kernel(%arg0: i32, %arg1: memref<16x16xbf16, #tpu.memory_space<vmem>>, %arg2: memref<16x128xbf16, #tpu.memory_space<vmem>>, %arg3: memref<16x128xbf16, #tpu.memory_space<vmem>>, %arg4: memref<1x128xf32, #tpu.memory_space<vmem>>, %arg5: memref<1x128xf32, #tpu.memory_space<vmem>>, %arg6: memref<16x128xbf16, #tpu.memory_space<vmem>>, %arg7: memref<16x128xbf16, #tpu.memory_space<vmem>>) attributes {dimension_semantics = [#tpu.dimension_semantics<parallel>], iteration_bounds = array<i64: 1>, scalar_prefetch = 0 : i64, scratch_operands = 0 : i64, tpu.core_type = #tpu.core_type<tc>, window_params = [{transform_indices = @transform_0, window_bounds = array<i64: 16, 16>}, {pipeline_mode = #tpu.pipeline_mode<synchronous>, transform_indices = @transform_1, window_bounds = array<i64: 16, 128>}, {pipeline_mode = #tpu.pipeline_mode<synchronous>, transform_indices = @transform_2, window_bounds = array<i64: 16, 128>}, {pipeline_mode = #tpu.pipeline_mode<synchronous>, transform_indices = @transform_3, window_bounds = array<i64: 1, 128>}, {pipeline_mode = #tpu.pipeline_mode<synchronous>, transform_indices = @transform_4, window_bounds = array<i64: 1, 128>}, {transform_indices = @transform_5, window_bounds = array<i64: 16, 128>}, {transform_indices = @transform_6, window_bounds = array<i64: 16, 128>}]} {
    %c0 = arith.constant 0 : index
    %c0_0 = arith.constant 0 : index
    %0 = vector.load %arg1[%c0, %c0_0] : memref<16x16xbf16, #tpu.memory_space<vmem>>, vector<16x16xbf16>
    %c0_1 = arith.constant 0 : index
    %c0_2 = arith.constant 0 : index
    %1 = vector.load %arg2[%c0_1, %c0_2] : memref<16x128xbf16, #tpu.memory_space<vmem>>, vector<16x128xbf16>
    %cst = arith.constant dense<0.000000e+00> : vector<16x128xf32>
    %2 = tpu.matmul %0, %1, %cst {dimension_numbers = #tpu.dot_dimension_numbers<[1], [0], [0], [1], [0, 0, 1, 1], [], []>} : vector<16x16xbf16>, vector<16x128xbf16>, vector<16x128xf32> -> vector<16x128xf32>
    %c0_3 = arith.constant 0 : index
    %c0_4 = arith.constant 0 : index
    %3 = vector.load %arg3[%c0_3, %c0_4] : memref<16x128xbf16, #tpu.memory_space<vmem>>, vector<16x128xbf16>
    %cst_5 = arith.constant dense<0.000000e+00> : vector<16x128xf32>
    %4 = tpu.matmul %0, %3, %cst_5 {dimension_numbers = #tpu.dot_dimension_numbers<[1], [0], [0], [1], [0, 0, 1, 1], [], []>} : vector<16x16xbf16>, vector<16x128xbf16>, vector<16x128xf32> -> vector<16x128xf32>
    %c0_6 = arith.constant 0 : index
    %c0_7 = arith.constant 0 : index
    %5 = vector.load %arg4[%c0_6, %c0_7] : memref<1x128xf32, #tpu.memory_space<vmem>>, vector<1x128xf32>
    %6 = vector.broadcast %5 : vector<1x128xf32> to vector<16x128xf32>
    %7 = arith.addf %2, %6 : vector<16x128xf32>
    %8 = arith.truncf %7 : vector<16x128xf32> to vector<16x128xbf16>
    %c0_8 = arith.constant 0 : index
    %c0_9 = arith.constant 0 : index
    %9 = vector.load %arg6[%c0_8, %c0_9] : memref<16x128xbf16, #tpu.memory_space<vmem>>, vector<16x128xbf16>
    tpu.vector_store %arg6[%c0_8, %c0_9], %8 {strides = array<i32>} : memref<16x128xbf16, #tpu.memory_space<vmem>>, vector<16x128xbf16>,
    %c0_10 = arith.constant 0 : index
    %c0_11 = arith.constant 0 : index
    %10 = vector.load %arg5[%c0_10, %c0_11] : memref<1x128xf32, #tpu.memory_space<vmem>>, vector<1x128xf32>
    %11 = vector.broadcast %10 : vector<1x128xf32> to vector<16x128xf32>
    %12 = arith.addf %4, %11 : vector<16x128xf32>
    %13 = arith.truncf %12 : vector<16x128xf32> to vector<16x128xbf16>
    %c0_12 = arith.constant 0 : index
    %c0_13 = arith.constant 0 : index
    %14 = vector.load %arg7[%c0_12, %c0_13] : memref<16x128xbf16, #tpu.memory_space<vmem>>, vector<16x128xbf16>
    tpu.vector_store %arg7[%c0_12, %c0_13], %13 {strides = array<i32>} : memref<16x128xbf16, #tpu.memory_space<vmem>>, vector<16x128xbf16>,
    return
  }
  func.func @transform_0(%arg0: i32) -> (i32, i32) {
    %c0_i32 = arith.constant 0 : i32
    %c0_i32_0 = arith.constant 0 : i32
    return %arg0, %c0_i32 : i32, i32
  }
  func.func @transform_1(%arg0: i32) -> (i32, i32) {
    %c0_i32 = arith.constant 0 : i32
    %c0_i32_0 = arith.constant 0 : i32
    %c0_i32_1 = arith.constant 0 : i32
    return %c0_i32, %c0_i32_0 : i32, i32
  }
  func.func @transform_2(%arg0: i32) -> (i32, i32) {
    %c0_i32 = arith.constant 0 : i32
    %c0_i32_0 = arith.constant 0 : i32
    %c0_i32_1 = arith.constant 0 : i32
    return %c0_i32, %c0_i32_0 : i32, i32
  }
  func.func @transform_3(%arg0: i32) -> (i32, i32) {
    %c0_i32 = arith.constant 0 : i32
    %c0_i32_0 = arith.constant 0 : i32
    %c0_i32_1 = arith.constant 0 : i32
    return %c0_i32, %c0_i32_0 : i32, i32
  }
  func.func @transform_4(%arg0: i32) -> (i32, i32) {
    %c0_i32 = arith.constant 0 : i32
    %c0_i32_0 = arith.constant 0 : i32
    %c0_i32_1 = arith.constant 0 : i32
    return %c0_i32, %c0_i32_0 : i32, i32
  }
  func.func @transform_5(%arg0: i32) -> (i32, i32) {
    %c0_i32 = arith.constant 0 : i32
    %c0_i32_0 = arith.constant 0 : i32
    return %arg0, %c0_i32 : i32, i32
  }
  func.func @transform_6(%arg0: i32) -> (i32, i32) {
    %c0_i32 = arith.constant 0 : i32
    %c0_i32_0 = arith.constant 0 : i32
    return %arg0, %c0_i32 : i32, i32
  }
}

</mosaic_0001>

<llo_original>
// kernel: tpu_custom_call.1
$region0: #{tpu_custom_call.1}
  #allocation0 [shape = 'u32[]', space=smem, size = 0x4, offset = 0x4, fixed_abs, tag = 'smem constant byte address 0x4 - core index']
  #allocation1 [shape = 'u32[144,128]{1,0:T(1,128)}', space=vmem, size = 0x12000, scoped, tag = 'internal scratch']
  %s0 = inlined_call_operand.hbm [shape: bf16[16,16], index: 0, kind: input, shape index: {}]
  %s1 = inlined_call_operand.hbm [shape: bf16[16,128], index: 1, kind: input, shape index: {}]
  %s2 = inlined_call_operand.hbm [shape: bf16[16,128], index: 2, kind: input, shape index: {}]
  %s3 = inlined_call_operand.vmem [shape: f32[1,128], index: 3, kind: input, shape index: {}]
  %s4 = inlined_call_operand.vmem [shape: f32[1,128], index: 4, kind: input, shape index: {}]
  %s5 = inlined_call_operand.hbm [shape: bf16[16,128], index: 5, kind: output, shape index: {0}]
  %s6 = inlined_call_operand.hbm [shape: bf16[16,128], index: 6, kind: output, shape index: {1}]
  %7 = xla_tuple %s5, %s6
  %s8 = sld [smem:[#allocation0]]
  $region50: #{tpu_custom_call.1} parent=0
    _
  %s10 = ssub.s32 1, %s8
  %s11 = scalar_select 0, %s10, %s8
  $region1: #{tpu_custom_call.1} parent=0
    #allocation2 [shape = 'u8[4096]{0}', space=vmem, size = 0x1000, scoped, tag = 'input window, operand 0, single buffered']
    #allocation3 [shape = 's32[1]{0}', space=sflag, size = 0x4, scoped, tag = 'scoped memory for tpu_custom_call.1']
    #allocation4 [shape = 's32[1]{0}', space=sflag, size = 0x4, scoped, tag = 'scoped memory for tpu_custom_call.1']
    #allocation5 [shape = 'u8[4096]{0}', space=vmem, size = 0x1000, scoped, tag = 'input window, operand 1, single buffered']
    #allocation6 [shape = 's32[1]{0}', space=sflag, size = 0x4, scoped, tag = 'scoped memory for tpu_custom_call.1']
    #allocation7 [shape = 'u8[4096]{0}', space=vmem, size = 0x1000, scoped, tag = 'input window, operand 2, single buffered']
    #allocation8 [shape = 'u8[4096]{0}', space=vmem, size = 0x1000, scoped, tag = 'output window, operand 0, single buffered']
    #allocation9 [shape = 'u8[4096]{0}', space=vmem, size = 0x1000, scoped, tag = 'output window, operand 1, single buffered']
    #allocation10 [shape = 's32[1]{0}', space=sflag, size = 0x4, scoped, tag = 'scoped memory for tpu_custom_call.1']
    %12 = vsyncpa [#allocation3], 0
    %13 = vsyncpa [#allocation6], 0
    %14 = vsyncpa [#allocation4], 0
    %15 = vsyncpa [#allocation10], 0
    // Predicated region
    $region2: #{tpu_custom_call.1} parent=1 // pred_check
      _
    $region3: #{tpu_custom_call.1} parent=1 // pred_check_branch
      %17 = sbr.rel (0) target = $region5
    $region4: #{tpu_custom_call.1} parent=1 // pred_region
      %s19 = ssub.s32 128, 128
      %20 = vsyncadd [#allocation3], %s19
      %s21 = sshll.u32 [#allocation2], 4
      %s22 = int_to_ptr.vmem [resolvable:$true] %s21
      %27 = dma.hbm_to_vmem [thread:$0]  %s0, 128, %s22, [#allocation3], 64, 64, 4
    $region5: #{tpu_custom_call.1} parent=1 // pred_fallthru
      _
    // Predicated region
    $region6: #{tpu_custom_call.1} parent=1 // pred_check
      _
    $region7: #{tpu_custom_call.1} parent=1 // pred_check_branch
      %29 = sbr.rel (0) target = $region9
    $region8: #{tpu_custom_call.1} parent=1 // pred_region
      %s31 = ssub.s32 128, 128
      %32 = vsyncadd [#allocation6], %s31
      %s33 = sshll.u32 [#allocation5], 4
      %s34 = int_to_ptr.vmem [resolvable:$true] %s33
      %39 = dma.hbm_to_vmem [thread:$0]  %s1, 128, %s34, [#allocation6], 64, 64, 4
    $region9: #{tpu_custom_call.1} parent=1 // pred_fallthru
      _
    // Predicated region
    $region10: #{tpu_custom_call.1} parent=1 // pred_check
      _
    $region11: #{tpu_custom_call.1} parent=1 // pred_check_branch
      %41 = sbr.rel (0) target = $region13
    $region12: #{tpu_custom_call.1} parent=1 // pred_region
      %s43 = ssub.s32 128, 128
      %44 = vsyncadd [#allocation6], %s43
      %s45 = sshll.u32 [#allocation7], 4
      %s46 = int_to_ptr.vmem [resolvable:$true] %s45
      %51 = dma.hbm_to_vmem [thread:$0]  %s2, 128, %s46, [#allocation6], 64, 64, 4
    $region13: #{tpu_custom_call.1} parent=1 // pred_fallthru
      _
    // Predicated region
    $region14: #{tpu_custom_call.1} parent=1 // pred_check
      _
    $region15: #{tpu_custom_call.1} parent=1 // pred_check_branch
      %53 = sbr.rel (0) target = $region17
    $region16: #{tpu_custom_call.1} parent=1 // pred_region
      _
    $region17: #{tpu_custom_call.1} parent=1 // pred_fallthru
      _
    // Predicated region
    $region18: #{tpu_custom_call.1} parent=1 // pred_check
      _
    $region19: #{tpu_custom_call.1} parent=1 // pred_check_branch
      %55 = sbr.rel (0) target = $region21
    $region20: #{tpu_custom_call.1} parent=1 // pred_region
      _
    $region21: #{tpu_custom_call.1} parent=1 // pred_fallthru
      _
    // Predicated region
    $region22: #{tpu_custom_call.1} parent=1 // pred_check
      _
    $region23: #{tpu_custom_call.1} parent=1 // pred_check_branch
      %57 = sbr.rel (0) target = $region25
    $region24: #{tpu_custom_call.1} parent=1 // pred_region
      %58 = dma.done [#allocation3], 128
    $region25: #{tpu_custom_call.1} parent=1 // pred_fallthru
      _
    // Predicated region
    $region26: #{tpu_custom_call.1} parent=1 // pred_check
      _
    $region27: #{tpu_custom_call.1} parent=1 // pred_check_branch
      %60 = sbr.rel (0) target = $region29
    $region28: #{tpu_custom_call.1} parent=1 // pred_region
      %61 = dma.done [#allocation6], 128
    $region29: #{tpu_custom_call.1} parent=1 // pred_fallthru
      _
    // Predicated region
    $region30: #{tpu_custom_call.1} parent=1 // pred_check
      _
    $region31: #{tpu_custom_call.1} parent=1 // pred_check_branch
      %63 = sbr.rel (0) target = $region33
    $region32: #{tpu_custom_call.1} parent=1 // pred_region
      %64 = dma.done [#allocation6], 128
    $region33: #{tpu_custom_call.1} parent=1 // pred_fallthru
      _
    %v66 = vld [vmem:[#allocation2] sm:$0xf]
    %v67 = vld [vmem:[#allocation2 + $0x4] sm:$0xf]
    %v68 = vld [vmem:[#allocation5] sm:$0xf]
    %v69 = vld [vmem:[#allocation5 + $0x4] sm:$0xf]
    %v70 = vld [vmem:[#allocation7] sm:$0xf]
    %v71 = vld [vmem:[#allocation7 + $0x4] sm:$0xf]
    %v72 = vld [vmem:[%s3] sm:$0x1]
    %v74 = vlaneseq
    %v75 = vshrl.u32 %v74, 7
    %v76 = vsub.s32 0, %v75
    %v77 = vrot.slane %v72, %v76
    %v81 = vunpack.c.l.b16 %v66
    %v82 = vunpack.c.l.b16 %v67
    %v83 = vpack.c.b16 %v82, %v81
    %v86 = vunpack.c.l.b16 %v68
    %v87 = vunpack.c.l.b16 %v69
    %v88 = vpack.c.b16 %v87, %v86
    %vm90 = vcmask 130048
    %v92 = vsel %vm90, %v83, 0
    %94 = vmatprep.subr.bf16.mxu0 0
    %95 = vmatpush1.bf16.msra.mxu0 %v88
    %96 = vmatprep.subr.bf16.mxu0 0
    %97 = vmatpush1.bf16.msra.mxu0 0
    %98 = vmatprep.subr.bf16.mxu0 0
    %99 = vmatpush1.bf16.msra.mxu0 0
    %100 = vmatprep.subr.bf16.mxu0 0
    %101 = vmatpush1.bf16.msra.mxu0 0
    %102 = vmatprep.subr.bf16.mxu0 0
    %103 = vmatpush1.bf16.msra.mxu0 0
    %104 = vmatprep.subr.bf16.mxu0 0
    %105 = vmatpush1.bf16.msra.mxu0 0
    %106 = vmatprep.subr.bf16.mxu0 0
    %107 = vmatpush1.bf16.msra.mxu0 0
    %108 = vmatprep.subr.bf16.mxu0 0
    %109 = vmatpush1.bf16.msra.mxu0 0
    %110 = vmatprep.subr.bf16.mxu0 0
    %111 = vmatpush1.bf16.msra.mxu0 0
    %112 = vmatprep.subr.bf16.mxu0 0
    %113 = vmatpush1.bf16.msra.mxu0 0
    %114 = vmatprep.subr.bf16.mxu0 0
    %115 = vmatpush1.bf16.msra.mxu0 0
    %116 = vmatprep.subr.bf16.mxu0 0
    %117 = vmatpush1.bf16.msra.mxu0 0
    %118 = vmatprep.subr.bf16.mxu0 0
    %119 = vmatpush1.bf16.msra.mxu0 0
    %120 = vmatprep.subr.bf16.mxu0 0
    %121 = vmatpush1.bf16.msra.mxu0 0
    %122 = vmatprep.subr.bf16.mxu0 0
    %123 = vmatpush1.bf16.msra.mxu0 0
    %124 = vmatprep.subr.bf16.mxu0 0
    %125 = vmatpush1.bf16.msra.mxu0 0
    %126 = vmatprep.mubr.bf16.mxu0 0
    %127 = vmatmul.mubr.bf16.gmra.mrb[0].mxu0 %v92
    %v128 = vpop.f32.mrb[0].mxu0
    %v129 = vadd.f32 %v77, %v128
    %v130 = vpop.f32.mrb[0].mxu0
    %v131 = vpop.f32.mrb[0].mxu0
    %v132 = vadd.f32 %v77, %v131
    %v133 = vpop.f32.mrb[0].mxu0
    %134 = vdwg.mxu0
    %v135 = vpack.c.bf16 %v132, %v129
    %v137 = vunpack.c.l.b16 %v135
    %v138 = vunpack.c.h.b16 %v135
    %v139 = vpack.c.b16 %v137, %v137
    %v140 = vpack.c.b16 %v138, %v138
    %143 = vst [vmem:[#allocation8] sm:$0xf] %v139
    %144 = vst [vmem:[#allocation8 + $0x4] sm:$0xf] %v140
    %v145 = vld [vmem:[%s4] sm:$0x1]
    %v147 = vlaneseq
    %v148 = vshrl.u32 %v147, 7
    %v149 = vsub.s32 0, %v148
    %v150 = vrot.slane %v145, %v149
    %v154 = vunpack.c.l.b16 %v70
    %v155 = vunpack.c.l.b16 %v71
    %v156 = vpack.c.b16 %v155, %v154
    %158 = vmatprep.subr.bf16.mxu0 0
    %159 = vmatpush1.bf16.msra.mxu0 %v156
    %160 = vmatprep.subr.bf16.mxu0 0
    %161 = vmatpush1.bf16.msra.mxu0 0
    %162 = vmatprep.subr.bf16.mxu0 0
    %163 = vmatpush1.bf16.msra.mxu0 0
    %164 = vmatprep.subr.bf16.mxu0 0
    %165 = vmatpush1.bf16.msra.mxu0 0
    %166 = vmatprep.subr.bf16.mxu0 0
    %167 = vmatpush1.bf16.msra.mxu0 0
    %168 = vmatprep.subr.bf16.mxu0 0
    %169 = vmatpush1.bf16.msra.mxu0 0
    %170 = vmatprep.subr.bf16.mxu0 0
    %171 = vmatpush1.bf16.msra.mxu0 0
    %172 = vmatprep.subr.bf16.mxu0 0
    %173 = vmatpush1.bf16.msra.mxu0 0
    %174 = vmatprep.subr.bf16.mxu0 0
    %175 = vmatpush1.bf16.msra.mxu0 0
    %176 = vmatprep.subr.bf16.mxu0 0
    %177 = vmatpush1.bf16.msra.mxu0 0
    %178 = vmatprep.subr.bf16.mxu0 0
    %179 = vmatpush1.bf16.msra.mxu0 0
    %180 = vmatprep.subr.bf16.mxu0 0
    %181 = vmatpush1.bf16.msra.mxu0 0
    %182 = vmatprep.subr.bf16.mxu0 0
    %183 = vmatpush1.bf16.msra.mxu0 0
    %184 = vmatprep.subr.bf16.mxu0 0
    %185 = vmatpush1.bf16.msra.mxu0 0
    %186 = vmatprep.subr.bf16.mxu0 0
    %187 = vmatpush1.bf16.msra.mxu0 0
    %188 = vmatprep.subr.bf16.mxu0 0
    %189 = vmatpush1.bf16.msra.mxu0 0
    %190 = vmatprep.mubr.bf16.mxu0 0
    %191 = vmatmul.mubr.bf16.gmra.mrb[0].mxu0 %v92
    %v192 = vpop.f32.mrb[0].mxu0
    %v193 = vadd.f32 %v150, %v192
    %v194 = vpop.f32.mrb[0].mxu0
    %v195 = vpop.f32.mrb[0].mxu0
    %v196 = vadd.f32 %v150, %v195
    %v197 = vpop.f32.mrb[0].mxu0
    %198 = vdwg.mxu0
    %v199 = vpack.c.bf16 %v196, %v193
    %v201 = vunpack.c.l.b16 %v199
    %v202 = vunpack.c.h.b16 %v199
    %v203 = vpack.c.b16 %v201, %v201
    %v204 = vpack.c.b16 %v202, %v202
    %207 = vst [vmem:[#allocation9] sm:$0xf] %v203
    %208 = vst [vmem:[#allocation9 + $0x4] sm:$0xf] %v204
    // Predicated region
    $region34: #{tpu_custom_call.1} parent=1 // pred_check
      _
    $region35: #{tpu_custom_call.1} parent=1 // pred_check_branch
      %210 = sbr.rel (0) target = $region37
    $region36: #{tpu_custom_call.1} parent=1 // pred_region
      %s212 = ssub.s32 128, 128
      %213 = vsyncadd [#allocation4], %s212
      %s214 = sshll.u32 [#allocation8], 4
      %s215 = int_to_ptr.vmem [resolvable:$true] %s214
      %220 = dma.vmem_to_hbm [thread:$0]  %s215, 128, %s5, [#allocation4], 64, 64, 4
    $region37: #{tpu_custom_call.1} parent=1 // pred_fallthru
      _
    // Predicated region
    $region38: #{tpu_custom_call.1} parent=1 // pred_check
      _
    $region39: #{tpu_custom_call.1} parent=1 // pred_check_branch
      %222 = sbr.rel (0) target = $region41
    $region40: #{tpu_custom_call.1} parent=1 // pred_region
      %s224 = ssub.s32 128, 128
      %225 = vsyncadd [#allocation10], %s224
      %s226 = sshll.u32 [#allocation9], 4
      %s227 = int_to_ptr.vmem [resolvable:$true] %s226
      %232 = dma.vmem_to_hbm [thread:$0]  %s227, 128, %s6, [#allocation10], 64, 64, 4
    $region41: #{tpu_custom_call.1} parent=1 // pred_fallthru
      _
    // Predicated region
    $region42: #{tpu_custom_call.1} parent=1 // pred_check
      _
    $region43: #{tpu_custom_call.1} parent=1 // pred_check_branch
      %234 = sbr.rel (0) target = $region45
    $region44: #{tpu_custom_call.1} parent=1 // pred_region
      %235 = dma.done [#allocation4], 128
    $region45: #{tpu_custom_call.1} parent=1 // pred_fallthru
      _
    // Predicated region
    $region46: #{tpu_custom_call.1} parent=1 // pred_check
      _
    $region47: #{tpu_custom_call.1} parent=1 // pred_check_branch
      %237 = sbr.rel (0) target = $region49
    $region48: #{tpu_custom_call.1} parent=1 // pred_region
      %238 = dma.done [#allocation10], 128
    $region49: #{tpu_custom_call.1} parent=1 // pred_fallthru
      _
    %239 = vsyncpa [#allocation3], 1
    %240 = vsyncpa [#allocation6], 1
    %241 = vsyncpa [#allocation4], 1
    %242 = vsyncpa [#allocation10], 1

</llo_original>
